<compile_context>
chip_gen: v7x
topology: tpu7x:2x2x1
jax: 0.10.0
libtpu: 0.0.40
codegen_flags: <defaults>
</compile_context>

<pallas_src>
import functools

import numpy as np
import jax
import jax.numpy as jnp
from jax.experimental import pallas as pl
from jax.experimental.pallas import tpu as pltpu

# ---- module hyper-parameters (small, but mel-filterbank-valid) -------------
SAMPLE_RATE = 2000
LENGTH = 512             # fft_size = hop_size = win_length = LENGTH
N_MELS = 128
EPS = 1e-8               # auraloss STFTLoss eps (clamp before sqrt / log floor)

_LANE = 128
_SUBLANE = 8
_FRAME_ALIGN = 16        # bf16 packed sublane tile
_MAX_TILE_FRAMES = 512   # frames of each signal per grid step (=> 1024 LHS rows)


# ---- deterministic constants (numpy, same math as librosa.filters.mel) -----
def _hz_to_mel(freqs):
    freqs = np.asarray(freqs, dtype=np.float64)
    f_sp = 200.0 / 3.0
    mels = freqs / f_sp
    min_log_hz = 1000.0
    min_log_mel = min_log_hz / f_sp
    logstep = np.log(6.4) / 27.0
    return np.where(
        freqs >= min_log_hz,
        min_log_mel + np.log(np.maximum(freqs, 1e-10) / min_log_hz) / logstep,
        mels,
    )


def _mel_to_hz(mels):
    mels = np.asarray(mels, dtype=np.float64)
    f_sp = 200.0 / 3.0
    freqs = f_sp * mels
    min_log_hz = 1000.0
    min_log_mel = min_log_hz / f_sp
    logstep = np.log(6.4) / 27.0
    return np.where(
        mels >= min_log_mel,
        min_log_hz * np.exp(logstep * (mels - min_log_mel)),
        freqs,
    )


def mel_filterbank(sr, n_fft, n_mels):
    """Slaney-scale, slaney-normalized mel filterbank, shape (n_mels, n_fft//2+1)."""
    n_freqs = n_fft // 2 + 1
    fftfreqs = np.linspace(0.0, sr / 2.0, n_freqs)
    mel_pts = np.linspace(_hz_to_mel(0.0), _hz_to_mel(sr / 2.0), n_mels + 2)
    mel_f = _mel_to_hz(mel_pts)
    fdiff = np.diff(mel_f)
    ramps = mel_f[:, None] - fftfreqs[None, :]
    lower = -ramps[:-2] / fdiff[:-1, None]
    upper = ramps[2:] / fdiff[1:, None]
    weights = np.maximum(0.0, np.minimum(lower, upper))
    enorm = 2.0 / (mel_f[2:n_mels + 2] - mel_f[:n_mels])
    weights = weights * enorm[:, None]
    return weights.astype(np.float32)


def dft_matrices(n_fft):
    """Real/imag one-sided DFT matrices, shape (n_fft, n_fft//2+1)."""
    n = np.arange(n_fft, dtype=np.float64)
    k = np.arange(n_fft // 2 + 1, dtype=np.float64)
    ang = 2.0 * np.pi * np.outer(n, k) / n_fft
    return np.cos(ang).astype(np.float32), (-np.sin(ang)).astype(np.float32)


def hann_periodic(n):
    """torch.hann_window(n) (periodic=True)."""
    return (0.5 - 0.5 * np.cos(2.0 * np.pi * np.arange(n) / n)).astype(np.float32)


def _round_up(a, m):
    return -(-a // m) * m


@functools.cache
def _stft_constants(sample_rate, n_fft, n_mels):
    """Window-folded, lane-padded [cos | -sin] basis and zero-padded mel^T.

    Bins with exactly-zero mel weight at the edges (DC and Nyquist for Slaney
    filterbanks, whose filter edges sit at 0 Hz and sr/2) are dropped so the
    padded bin count lands on 256 lanes instead of 384.
    """
    k = n_fft // 2 + 1
    fb = mel_filterbank(sample_rate, n_fft, n_mels)   # (n_mels, k)
    lo = 1 if not np.any(fb[:, 0]) else 0             # drop DC iff weight == 0
    hi = k - 1 if not np.any(fb[:, k - 1]) else k     # drop Nyquist iff weight == 0
    kept = hi - lo
    k_pad = _round_up(kept, _LANE)                    # 255 -> 256

    win = hann_periodic(n_fft)
    cos_m, sin_m = dft_matrices(n_fft)                # (n_fft, k) each
    wdft = np.zeros((n_fft, 2 * k_pad), np.float32)   # [win*cos | win*(-sin)]
    wdft[:, :kept] = win[:, None] * cos_m[:, lo:hi]
    wdft[:, k_pad:k_pad + kept] = win[:, None] * sin_m[:, lo:hi]

    mel_t = np.zeros((k_pad, n_mels), np.float32)     # zero rows for padded bins
    mel_t[:kept, :] = fb[:, lo:hi].T
    return wdft, mel_t, k_pad


# ---- Pallas kernel ----------------------------------------------------------
def _mel_stft_loss_kernel(xf_ref, yf_ref, wdft_ref, melT_ref, psum_ref):
    # xf_ref/yf_ref : (T, n_fft)   bf16 -- one tile of x / y frames
    # wdft_ref      : (n_fft, 2Kp) bf16 -- hann window folded into [cos | -sin]
    # melT_ref      : (Kp, M)      bf16 -- mel filterbank^T (zero rows for pad bins)
    # psum_ref      : (8, M)       f32  -- per-tile partial sum of |dlog| + |dlin|
    k_pad = wdft_ref.shape[1] // 2
    tile = xf_ref.shape[0]
    n_mels = melT_ref.shape[1]

    # Stack x and y along sublanes in VMEM (cheap copy, hidden under the
    # matmul) so the shared RHS weights stream through the MXU once.
    frames = jnp.concatenate([xf_ref[...], yf_ref[...]], axis=0)   # (2T, n_fft)
    reim = jnp.dot(frames, wdft_ref[...],
                   preferred_element_type=jnp.float32)             # (2T, 2*Kp) f32
    re = reim[:, :k_pad]                                           # 128-lane aligned
    im = reim[:, k_pad:]
    mag = jnp.sqrt(jnp.maximum(re * re + im * im, EPS))            # |STFT| (f32)

    # Explicit single bf16 MXU pass for the mel projection (f32 accumulate).
    mel = jnp.dot(mag.astype(jnp.bfloat16), melT_ref[...],
                  preferred_element_type=jnp.float32)              # (2T, M) f32

    # Note: auraloss clamps the magnitude (done above); the extra floor on the
    # mel output is a deliberate robustness deviation for near-silent signals.
    x_mel = jnp.maximum(mel[:tile], EPS)
    y_mel = jnp.maximum(mel[tile:], EPS)
    # w_log_mag * L1(log mel) + w_lin_mag * L1(mel), fused into one pass.
    d = jnp.abs(jnp.log(x_mel / y_mel)) + jnp.abs(x_mel - y_mel)   # (T, M)

    # Lane/sublane-dense partial sum: fold T rows into 8 sublane rows.
    psum_ref[...] = jnp.sum(
        d.reshape(tile // _SUBLANE, _SUBLANE, n_mels), axis=0)


# ---- wrapper ----------------------------------------------------------------
def mel_spectral_distance(x, y, sample_rate=SAMPLE_RATE, length=LENGTH):
    """x, y: (batch, channels, seq_len) float, seq_len multiple of `length`."""
    bs, chs, seq_len = x.shape
    assert y.shape == x.shape
    assert seq_len % length == 0 and seq_len >= length
    n_fft = hop = length
    n_frames = 1 + seq_len // hop          # torch.stft(center=True) frame count
    pad = n_fft // 2

    def frame(sig):
        # hop == n_fft: the reflect-padded signal reshapes directly into the
        # frame matrix (no gather/stack copy); fuse the bf16 cast here.
        sig2 = sig.reshape(bs * chs, seq_len)
        p = jnp.pad(sig2, ((0, 0), (pad, pad)), mode="reflect")
        return p.reshape(bs * chs * n_frames, n_fft).astype(jnp.bfloat16)

    xf = frame(x)
    yf = frame(y)

    rows = bs * chs * n_frames
    # >= 2 grid steps whenever possible so both v7x TensorCores get work;
    # tile aligned to 16 rows (bf16 packed sublane tile).
    tile = min(_MAX_TILE_FRAMES, _round_up(-(-rows // 2), _FRAME_ALIGN))
    num_tiles = -(-rows // tile)
    rows_pad = num_tiles * tile
    if rows_pad != rows:
        # Padded zero frames are identical in x and y -> contribute exactly 0.
        zpad = ((0, rows_pad - rows), (0, 0))
        xf = jnp.pad(xf, zpad)
        yf = jnp.pad(yf, zpad)

    wdft_np, melT_np, k_pad = _stft_constants(sample_rate, n_fft, N_MELS)
    wdft = jnp.asarray(wdft_np, dtype=jnp.bfloat16)   # (n_fft, 2*k_pad)
    melT = jnp.asarray(melT_np, dtype=jnp.bfloat16)   # (k_pad, N_MELS)

    psums = pl.pallas_call(
        _mel_stft_loss_kernel,
        out_shape=jax.ShapeDtypeStruct((num_tiles * _SUBLANE, N_MELS), jnp.float32),
        grid=(num_tiles,),
        in_specs=[
            pl.BlockSpec((tile, n_fft), lambda i: (i, 0)),          # x frame tiles
            pl.BlockSpec((tile, n_fft), lambda i: (i, 0)),          # y frame tiles
            pl.BlockSpec((n_fft, 2 * k_pad), lambda i: (0, 0)),     # resident const
            pl.BlockSpec((k_pad, N_MELS), lambda i: (0, 0)),        # resident const
        ],
        out_specs=pl.BlockSpec((_SUBLANE, N_MELS), lambda i: (i, 0)),
        compiler_params=pltpu.CompilerParams(
            dimension_semantics=("parallel",),
            vmem_limit_bytes=64 * 1024 * 1024),
    )(xf, yf, wdft, melT)

    # mean(|dlog|) + mean(|dlin|) == sum(d) / (true_rows * n_mels)
    return jnp.sum(psums) / (rows * N_MELS)


# ---- demo -------------------------------------------------------------------
if __name__ == "__main__":
    key = jax.random.PRNGKey(0)
    k1, k2 = jax.random.split(key)
    # small shapes consistent with the module's forward: (batch, channels, length)
    x = jax.random.normal(k1, (2, 2, LENGTH), dtype=jnp.float32)
    y = jax.random.normal(k2, (2, 2, LENGTH), dtype=jnp.float32)

    loss = mel_spectral_distance(x, y)
    loss = jax.block_until_ready(loss)
    if not bool(jnp.isfinite(loss)):
        raise RuntimeError("non-finite loss")
    print("KERNEL_OK")
</pallas_src>

<mosaic_0001>
module attributes {stable_mosaic.version = 11 : i64} {
  func.func @_mel_stft_loss_kernel(%arg0: i32, %arg1: memref<16x512xbf16, #tpu.memory_space<vmem>>, %arg2: memref<16x512xbf16, #tpu.memory_space<vmem>>, %arg3: memref<512x512xbf16, #tpu.memory_space<vmem>>, %arg4: memref<256x128xbf16, #tpu.memory_space<vmem>>, %arg5: memref<8x128xf32, #tpu.memory_space<vmem>>) attributes {dimension_semantics = [#tpu.dimension_semantics<parallel>], iteration_bounds = array<i64: 1>, scalar_prefetch = 0 : i64, scratch_operands = 0 : i64, tpu.core_type = #tpu.core_type<tc>, window_params = [{transform_indices = @transform_0, window_bounds = array<i64: 16, 512>}, {transform_indices = @transform_1, window_bounds = array<i64: 16, 512>}, {pipeline_mode = #tpu.pipeline_mode<synchronous>, transform_indices = @transform_2, window_bounds = array<i64: 512, 512>}, {pipeline_mode = #tpu.pipeline_mode<synchronous>, transform_indices = @transform_3, window_bounds = array<i64: 256, 128>}, {transform_indices = @transform_4, window_bounds = array<i64: 8, 128>}]} {
    %c0 = arith.constant 0 : index
    %c0_0 = arith.constant 0 : index
    %0 = vector.load %arg1[%c0, %c0_0] : memref<16x512xbf16, #tpu.memory_space<vmem>>, vector<16x512xbf16>
    %c0_1 = arith.constant 0 : index
    %c0_2 = arith.constant 0 : index
    %1 = vector.load %arg2[%c0_1, %c0_2] : memref<16x512xbf16, #tpu.memory_space<vmem>>, vector<16x512xbf16>
    %2 = tpu.concatenate %0, %1 in 0 : vector<16x512xbf16>, vector<16x512xbf16> -> vector<32x512xbf16>
    %c0_3 = arith.constant 0 : index
    %c0_4 = arith.constant 0 : index
    %3 = vector.load %arg3[%c0_3, %c0_4] : memref<512x512xbf16, #tpu.memory_space<vmem>>, vector<512x512xbf16>
    %cst = arith.constant dense<0.000000e+00> : vector<32x512xf32>
    %4 = tpu.matmul %2, %3, %cst {dimension_numbers = #tpu.dot_dimension_numbers<[1], [0], [0], [1], [0, 0, 1, 1], [], []>} : vector<32x512xbf16>, vector<512x512xbf16>, vector<32x512xf32> -> vector<32x512xf32>
    %5 = vector.extract_strided_slice %4 {offsets = [0, 0], sizes = [32, 256], strides = [1, 1]} : vector<32x512xf32> to vector<32x256xf32>
    %6 = vector.extract_strided_slice %4 {offsets = [0, 256], sizes = [32, 256], strides = [1, 1]} : vector<32x512xf32> to vector<32x256xf32>
    %7 = arith.mulf %5, %5 : vector<32x256xf32>
    %8 = arith.mulf %6, %6 : vector<32x256xf32>
    %9 = arith.addf %7, %8 : vector<32x256xf32>
    %cst_5 = arith.constant 9.99999993E-9 : f32
    %10 = vector.broadcast %cst_5 : f32 to vector<32x256xf32>
    %11 = arith.maximumf %9, %10 : vector<32x256xf32>
    %12 = math.sqrt %11 : vector<32x256xf32>
    %13 = arith.truncf %12 : vector<32x256xf32> to vector<32x256xbf16>
    %c0_6 = arith.constant 0 : index
    %c0_7 = arith.constant 0 : index
    %14 = vector.load %arg4[%c0_6, %c0_7] : memref<256x128xbf16, #tpu.memory_space<vmem>>, vector<256x128xbf16>
    %cst_8 = arith.constant dense<0.000000e+00> : vector<32x128xf32>
    %15 = tpu.matmul %13, %14, %cst_8 {dimension_numbers = #tpu.dot_dimension_numbers<[1], [0], [0], [1], [0, 0, 1, 1], [], []>} : vector<32x256xbf16>, vector<256x128xbf16>, vector<32x128xf32> -> vector<32x128xf32>
    %16 = vector.extract_strided_slice %15 {offsets = [0, 0], sizes = [16, 128], strides = [1, 1]} : vector<32x128xf32> to vector<16x128xf32>
    %cst_9 = arith.constant 9.99999993E-9 : f32
    %17 = vector.broadcast %cst_9 : f32 to vector<16x128xf32>
    %18 = arith.maximumf %16, %17 : vector<16x128xf32>
    %19 = vector.extract_strided_slice %15 {offsets = [16, 0], sizes = [16, 128], strides = [1, 1]} : vector<32x128xf32> to vector<16x128xf32>
    %cst_10 = arith.constant 9.99999993E-9 : f32
    %20 = vector.broadcast %cst_10 : f32 to vector<16x128xf32>
    %21 = arith.maximumf %19, %20 : vector<16x128xf32>
    %22 = arith.divf %18, %21 : vector<16x128xf32>
    %23 = math.log %22 : vector<16x128xf32>
    %24 = math.absf %23 : vector<16x128xf32>
    %25 = arith.subf %18, %21 : vector<16x128xf32>
    %26 = math.absf %25 : vector<16x128xf32>
    %27 = arith.addf %24, %26 : vector<16x128xf32>
    %28 = vector.shape_cast %27 : vector<16x128xf32> to vector<2x8x128xf32>
    %cst_11 = arith.constant dense<0.000000e+00> : vector<8x128xf32>
    %29 = vector.multi_reduction <add>, %28, %cst_11 [0] : vector<2x8x128xf32> to vector<8x128xf32>
    %c0_12 = arith.constant 0 : index
    %c0_13 = arith.constant 0 : index
    %30 = vector.load %arg5[%c0_12, %c0_13] : memref<8x128xf32, #tpu.memory_space<vmem>>, vector<8x128xf32>
    tpu.vector_store %arg5[%c0_12, %c0_13], %29 {strides = array<i32>} : memref<8x128xf32, #tpu.memory_space<vmem>>, vector<8x128xf32>,
    return
  }
  func.func @transform_0(%arg0: i32) -> (i32, i32) {
    %c0_i32 = arith.constant 0 : i32
    %c0_i32_0 = arith.constant 0 : i32
    return %arg0, %c0_i32 : i32, i32
  }
  func.func @transform_1(%arg0: i32) -> (i32, i32) {
    %c0_i32 = arith.constant 0 : i32
    %c0_i32_0 = arith.constant 0 : i32
    return %arg0, %c0_i32 : i32, i32
  }
  func.func @transform_2(%arg0: i32) -> (i32, i32) {
    %c0_i32 = arith.constant 0 : i32
    %c0_i32_0 = arith.constant 0 : i32
    %c0_i32_1 = arith.constant 0 : i32
    return %c0_i32, %c0_i32_0 : i32, i32
  }
  func.func @transform_3(%arg0: i32) -> (i32, i32) {
    %c0_i32 = arith.constant 0 : i32
    %c0_i32_0 = arith.constant 0 : i32
    %c0_i32_1 = arith.constant 0 : i32
    return %c0_i32, %c0_i32_0 : i32, i32
  }
  func.func @transform_4(%arg0: i32) -> (i32, i32) {
    %c0_i32 = arith.constant 0 : i32
    %c0_i32_0 = arith.constant 0 : i32
    return %arg0, %c0_i32 : i32, i32
  }
}

</mosaic_0001>

<llo_original>
// kernel: tpu_custom_call.1
$region0: #{tpu_custom_call.1}
  #allocation0 [shape = 'u32[]', space=smem, size = 0x4, offset = 0x4, fixed_abs, tag = 'smem constant byte address 0x4 - core index']
  #allocation1 [shape = 'u32[144,128]{1,0:T(1,128)}', space=vmem, size = 0x12000, scoped, tag = 'internal scratch']
  %s0 = inlined_call_operand.hbm [shape: bf16[16,512], index: 0, kind: input, shape index: {}]
  %s1 = inlined_call_operand.hbm [shape: bf16[16,512], index: 1, kind: input, shape index: {}]
  %s2 = inlined_call_operand.hbm [shape: bf16[512,512], index: 2, kind: input, shape index: {}]
  %s3 = inlined_call_operand.hbm [shape: bf16[256,128], index: 3, kind: input, shape index: {}]
  %s4 = inlined_call_operand.hbm [shape: f32[8,128], index: 4, kind: output, shape index: {}]
  %s5 = sld [smem:[#allocation0]]
  $region42: #{tpu_custom_call.1} parent=0
    _
  %s7 = ssub.s32 1, %s5
  %s8 = scalar_select 0, %s7, %s5
  $region1: #{tpu_custom_call.1} parent=0
    #allocation2 [shape = 'u8[16384]{0}', space=vmem, size = 0x4000, scoped, tag = 'input window, operand 0, single buffered']
    #allocation3 [shape = 's32[1]{0}', space=sflag, size = 0x4, scoped, tag = 'scoped memory for tpu_custom_call.1']
    #allocation4 [shape = 's32[1]{0}', space=sflag, size = 0x4, scoped, tag = 'scoped memory for tpu_custom_call.1']
    #allocation5 [shape = 'u8[16384]{0}', space=vmem, size = 0x4000, scoped, tag = 'input window, operand 1, single buffered']
    #allocation6 [shape = 's32[1]{0}', space=sflag, size = 0x4, scoped, tag = 'scoped memory for tpu_custom_call.1']
    #allocation7 [shape = 'u8[524288]{0}', space=vmem, size = 0x80000, scoped, tag = 'input window, operand 2, single buffered']
    #allocation8 [shape = 'u8[65536]{0}', space=vmem, size = 0x10000, scoped, tag = 'input window, operand 3, single buffered']
    #allocation9 [shape = 's32[1]{0}', space=sflag, size = 0x4, scoped, tag = 'scoped memory for tpu_custom_call.1']
    #allocation10 [shape = 'u8[4096]{0}', space=vmem, size = 0x1000, scoped, tag = 'output window, operand 0, single buffered']
    %9 = vsyncpa [#allocation3], 0
    %10 = vsyncpa [#allocation6], 0
    %11 = vsyncpa [#allocation9], 0
    %12 = vsyncpa [#allocation4], 0
    // Predicated region
    $region2: #{tpu_custom_call.1} parent=1 // pred_check
      _
    $region3: #{tpu_custom_call.1} parent=1 // pred_check_branch
      %14 = sbr.rel (0) target = $region5
    $region4: #{tpu_custom_call.1} parent=1 // pred_region
      %s16 = ssub.s32 512, 512
      %17 = vsyncadd [#allocation3], %s16
      %s18 = sshll.u32 [#allocation2], 4
      %s19 = int_to_ptr.vmem [resolvable:$true] %s18
      %24 = dma.hbm_to_vmem [thread:$0]  %s0, 512, %s19, [#allocation3], 256, 256, 16
    $region5: #{tpu_custom_call.1} parent=1 // pred_fallthru
      _
    // Predicated region
    $region6: #{tpu_custom_call.1} parent=1 // pred_check
      _
    $region7: #{tpu_custom_call.1} parent=1 // pred_check_branch
      %26 = sbr.rel (0) target = $region9
    $region8: #{tpu_custom_call.1} parent=1 // pred_region
      %s28 = ssub.s32 512, 512
      %29 = vsyncadd [#allocation6], %s28
      %s30 = sshll.u32 [#allocation5], 4
      %s31 = int_to_ptr.vmem [resolvable:$true] %s30
      %36 = dma.hbm_to_vmem [thread:$0]  %s1, 512, %s31, [#allocation6], 256, 256, 16
    $region9: #{tpu_custom_call.1} parent=1 // pred_fallthru
      _
    // Predicated region
    $region10: #{tpu_custom_call.1} parent=1 // pred_check
      _
    $region11: #{tpu_custom_call.1} parent=1 // pred_check_branch
      %38 = sbr.rel (0) target = $region13
    $region12: #{tpu_custom_call.1} parent=1 // pred_region
      %s40 = ssub.s32 16384, 16384
      %41 = vsyncadd [#allocation6], %s40
      %s42 = sshll.u32 [#allocation7], 4
      %s43 = int_to_ptr.vmem [resolvable:$true] %s42
      %48 = dma.hbm_to_vmem [thread:$0]  %s2, 16384, %s43, [#allocation6], 256, 256, 16
    $region13: #{tpu_custom_call.1} parent=1 // pred_fallthru
      _
    // Predicated region
    $region14: #{tpu_custom_call.1} parent=1 // pred_check
      _
    $region15: #{tpu_custom_call.1} parent=1 // pred_check_branch
      %50 = sbr.rel (0) target = $region17
    $region16: #{tpu_custom_call.1} parent=1 // pred_region
      %s52 = ssub.s32 2048, 2048
      %53 = vsyncadd [#allocation9], %s52
      %s54 = sshll.u32 [#allocation8], 4
      %s55 = int_to_ptr.vmem [resolvable:$true] %s54
      %60 = dma.hbm_to_vmem [thread:$0]  %s3, 2048, %s55, [#allocation9], 64, 64, 4
    $region17: #{tpu_custom_call.1} parent=1 // pred_fallthru
      _
    // Predicated region
    $region18: #{tpu_custom_call.1} parent=1 // pred_check
      _
    $region19: #{tpu_custom_call.1} parent=1 // pred_check_branch
      %62 = sbr.rel (0) target = $region21
    $region20: #{tpu_custom_call.1} parent=1 // pred_region
      %63 = dma.done [#allocation3], 512
    $region21: #{tpu_custom_call.1} parent=1 // pred_fallthru
      _
    // Predicated region
    $region22: #{tpu_custom_call.1} parent=1 // pred_check
      _
    $region23: #{tpu_custom_call.1} parent=1 // pred_check_branch
      %65 = sbr.rel (0) target = $region25
    $region24: #{tpu_custom_call.1} parent=1 // pred_region
      %66 = dma.done [#allocation6], 512
    $region25: #{tpu_custom_call.1} parent=1 // pred_fallthru
      _
    // Predicated region
    $region26: #{tpu_custom_call.1} parent=1 // pred_check
      _
    $region27: #{tpu_custom_call.1} parent=1 // pred_check_branch
      %68 = sbr.rel (0) target = $region29
    $region28: #{tpu_custom_call.1} parent=1 // pred_region
      %69 = dma.done [#allocation6], 16384
    $region29: #{tpu_custom_call.1} parent=1 // pred_fallthru
      _
    // Predicated region
    $region30: #{tpu_custom_call.1} parent=1 // pred_check
      _
    $region31: #{tpu_custom_call.1} parent=1 // pred_check_branch
      %71 = sbr.rel (0) target = $region33
    $region32: #{tpu_custom_call.1} parent=1 // pred_region
      %72 = dma.done [#allocation9], 2048
    $region33: #{tpu_custom_call.1} parent=1 // pred_fallthru
      _
    %v74 = vld [vmem:[#allocation2] sm:$0xff]
    %v75 = vld [vmem:[#allocation2 + $0x8] sm:$0xff]
    %v76 = vld [vmem:[#allocation2 + $0x10] sm:$0xff]
    %v77 = vld [vmem:[#allocation2 + $0x18] sm:$0xff]
    %v78 = vld [vmem:[#allocation5] sm:$0xff]
    %v79 = vld [vmem:[#allocation5 + $0x8] sm:$0xff]
    %v80 = vld [vmem:[#allocation5 + $0x10] sm:$0xff]
    %v81 = vld [vmem:[#allocation5 + $0x18] sm:$0xff]
    %v86 = vunpack.c.l.b16 %v74
    %v87 = vunpack.c.h.b16 %v74
    %v88 = vunpack.c.l.b16 %v75
    %v89 = vunpack.c.h.b16 %v75
    %v90 = vunpack.c.l.b16 %v76
    %v91 = vunpack.c.h.b16 %v76
    %v92 = vunpack.c.l.b16 %v77
    %v93 = vunpack.c.h.b16 %v77
    %v94 = vpack.c.b16 %v90, %v86
    %v95 = vpack.c.b16 %v91, %v87
    %v96 = vpack.c.b16 %v92, %v88
    %v97 = vpack.c.b16 %v93, %v89
    %v106 = vunpack.c.l.b16 %v78
    %v107 = vunpack.c.h.b16 %v78
    %v108 = vunpack.c.l.b16 %v79
    %v109 = vunpack.c.h.b16 %v79
    %v110 = vunpack.c.l.b16 %v80
    %v111 = vunpack.c.h.b16 %v80
    %v112 = vunpack.c.l.b16 %v81
    %v113 = vunpack.c.h.b16 %v81
    %v114 = vpack.c.b16 %v110, %v106
    %v115 = vpack.c.b16 %v111, %v107
    %v116 = vpack.c.b16 %v112, %v108
    %v117 = vpack.c.b16 %v113, %v109
    %v122 = vld [vmem:[#allocation7] sm:$0xff]
    %v123 = vld [vmem:[#allocation7 + $0x8] sm:$0xff]
    %v124 = vld [vmem:[#allocation7 + $0x10] sm:$0xff]
    %v125 = vld [vmem:[#allocation7 + $0x18] sm:$0xff]
    %v126 = vld [vmem:[#allocation7 + $0x20] sm:$0xff]
    %v127 = vld [vmem:[#allocation7 + $0x28] sm:$0xff]
    %v128 = vld [vmem:[#allocation7 + $0x30] sm:$0xff]
    %v129 = vld [vmem:[#allocation7 + $0x38] sm:$0xff]
    %v130 = vld [vmem:[#allocation7 + $0x40] sm:$0xff]
    %v131 = vld [vmem:[#allocation7 + $0x48] sm:$0xff]
    %v132 = vld [vmem:[#allocation7 + $0x50] sm:$0xff]
    %v133 = vld [vmem:[#allocation7 + $0x58] sm:$0xff]
    %v134 = vld [vmem:[#allocation7 + $0x60] sm:$0xff]
    %v135 = vld [vmem:[#allocation7 + $0x68] sm:$0xff]
    %v136 = vld [vmem:[#allocation7 + $0x70] sm:$0xff]
    %v137 = vld [vmem:[#allocation7 + $0x78] sm:$0xff]
    %v138 = vld [vmem:[#allocation7 + $0x80] sm:$0xff]
    %v139 = vld [vmem:[#allocation7 + $0x88] sm:$0xff]
    %v140 = vld [vmem:[#allocation7 + $0x90] sm:$0xff]
    %v141 = vld [vmem:[#allocation7 + $0x98] sm:$0xff]
    %v142 = vld [vmem:[#allocation7 + $0xa0] sm:$0xff]
    %v143 = vld [vmem:[#allocation7 + $0xa8] sm:$0xff]
    %v144 = vld [vmem:[#allocation7 + $0xb0] sm:$0xff]
    %v145 = vld [vmem:[#allocation7 + $0xb8] sm:$0xff]
    %v146 = vld [vmem:[#allocation7 + $0xc0] sm:$0xff]
    %v147 = vld [vmem:[#allocation7 + $0xc8] sm:$0xff]
    %v148 = vld [vmem:[#allocation7 + $0xd0] sm:$0xff]
    %v149 = vld [vmem:[#allocation7 + $0xd8] sm:$0xff]
    %v150 = vld [vmem:[#allocation7 + $0xe0] sm:$0xff]
    %v151 = vld [vmem:[#allocation7 + $0xe8] sm:$0xff]
    %v152 = vld [vmem:[#allocation7 + $0xf0] sm:$0xff]
    %v153 = vld [vmem:[#allocation7 + $0xf8] sm:$0xff]
    %v154 = vld [vmem:[#allocation7 + $0x100] sm:$0xff]
    %v155 = vld [vmem:[#allocation7 + $0x108] sm:$0xff]
    %v156 = vld [vmem:[#allocation7 + $0x110] sm:$0xff]
    %v157 = vld [vmem:[#allocation7 + $0x118] sm:$0xff]
    %v158 = vld [vmem:[#allocation7 + $0x120] sm:$0xff]
    %v159 = vld [vmem:[#allocation7 + $0x128] sm:$0xff]
    %v160 = vld [vmem:[#allocation7 + $0x130] sm:$0xff]
    %v161 = vld [vmem:[#allocation7 + $0x138] sm:$0xff]
    %v162 = vld [vmem:[#allocation7 + $0x140] sm:$0xff]
    %v163 = vld [vmem:[#allocation7 + $0x148] sm:$0xff]
    %v164 = vld [vmem:[#allocation7 + $0x150] sm:$0xff]
    %v165 = vld [vmem:[#allocation7 + $0x158] sm:$0xff]
    %v166 = vld [vmem:[#allocation7 + $0x160] sm:$0xff]
    %v167 = vld [vmem:[#allocation7 + $0x168] sm:$0xff]
    %v168 = vld [vmem:[#allocation7 + $0x170] sm:$0xff]
    %v169 = vld [vmem:[#allocation7 + $0x178] sm:$0xff]
    %v170 = vld [vmem:[#allocation7 + $0x180] sm:$0xff]
    %v171 = vld [vmem:[#allocation7 + $0x188] sm:$0xff]
    %v172 = vld [vmem:[#allocation7 + $0x190] sm:$0xff]
    %v173 = vld [vmem:[#allocation7 + $0x198] sm:$0xff]
    %v174 = vld [vmem:[#allocation7 + $0x1a0] sm:$0xff]
    %v175 = vld [vmem:[#allocation7 + $0x1a8] sm:$0xff]
    %v176 = vld [vmem:[#allocation7 + $0x1b0] sm:$0xff]
    %v177 = vld [vmem:[#allocation7 + $0x1b8] sm:$0xff]
    %v178 = vld [vmem:[#allocation7 + $0x1c0] sm:$0xff]
    %v179 = vld [vmem:[#allocation7 + $0x1c8] sm:$0xff]
    %v180 = vld [vmem:[#allocation7 + $0x1d0] sm:$0xff]
    %v181 = vld [vmem:[#allocation7 + $0x1d8] sm:$0xff]
    %v182 = vld [vmem:[#allocation7 + $0x1e0] sm:$0xff]
    %v183 = vld [vmem:[#allocation7 + $0x1e8] sm:$0xff]
    %v184 = vld [vmem:[#allocation7 + $0x1f0] sm:$0xff]
    %v185 = vld [vmem:[#allocation7 + $0x1f8] sm:$0xff]
    %v186 = vld [vmem:[#allocation7 + $0x200] sm:$0xff]
    %v187 = vld [vmem:[#allocation7 + $0x208] sm:$0xff]
    %v188 = vld [vmem:[#allocation7 + $0x210] sm:$0xff]
    %v189 = vld [vmem:[#allocation7 + $0x218] sm:$0xff]
    %v190 = vld [vmem:[#allocation7 + $0x220] sm:$0xff]
    %v191 = vld [vmem:[#allocation7 + $0x228] sm:$0xff]
    %v192 = vld [vmem:[#allocation7 + $0x230] sm:$0xff]
    %v193 = vld [vmem:[#allocation7 + $0x238] sm:$0xff]
    %v194 = vld [vmem:[#allocation7 + $0x240] sm:$0xff]
    %v195 = vld [vmem:[#allocation7 + $0x248] sm:$0xff]
    %v196 = vld [vmem:[#allocation7 + $0x250] sm:$0xff]
    %v197 = vld [vmem:[#allocation7 + $0x258] sm:$0xff]
    %v198 = vld [vmem:[#allocation7 + $0x260] sm:$0xff]
    %v199 = vld [vmem:[#allocation7 + $0x268] sm:$0xff]
    %v200 = vld [vmem:[#allocation7 + $0x270] sm:$0xff]
    %v201 = vld [vmem:[#allocation7 + $0x278] sm:$0xff]
    %v202 = vld [vmem:[#allocation7 + $0x280] sm:$0xff]
    %v203 = vld [vmem:[#allocation7 + $0x288] sm:$0xff]
    %v204 = vld [vmem:[#allocation7 + $0x290] sm:$0xff]
    %v205 = vld [vmem:[#allocation7 + $0x298] sm:$0xff]
    %v206 = vld [vmem:[#allocation7 + $0x2a0] sm:$0xff]
    %v207 = vld [vmem:[#allocation7 + $0x2a8] sm:$0xff]
    %v208 = vld [vmem:[#allocation7 + $0x2b0] sm:$0xff]
    %v209 = vld [vmem:[#allocation7 + $0x2b8] sm:$0xff]
    %v210 = vld [vmem:[#allocation7 + $0x2c0] sm:$0xff]
    %v211 = vld [vmem:[#allocation7 + $0x2c8] sm:$0xff]
    %v212 = vld [vmem:[#allocation7 + $0x2d0] sm:$0xff]
    %v213 = vld [vmem:[#allocation7 + $0x2d8] sm:$0xff]
    %v214 = vld [vmem:[#allocation7 + $0x2e0] sm:$0xff]
    %v215 = vld [vmem:[#allocation7 + $0x2e8] sm:$0xff]
    %v216 = vld [vmem:[#allocation7 + $0x2f0] sm:$0xff]
    %v217 = vld [vmem:[#allocation7 + $0x2f8] sm:$0xff]
    %v218 = vld [vmem:[#allocation7 + $0x300] sm:$0xff]
    %v219 = vld [vmem:[#allocation7 + $0x308] sm:$0xff]
    %v220 = vld [vmem:[#allocation7 + $0x310] sm:$0xff]
    %v221 = vld [vmem:[#allocation7 + $0x318] sm:$0xff]
    %v222 = vld [vmem:[#allocation7 + $0x320] sm:$0xff]
    %v223 = vld [vmem:[#allocation7 + $0x328] sm:$0xff]
    %v224 = vld [vmem:[#allocation7 + $0x330] sm:$0xff]
    %v225 = vld [vmem:[#allocation7 + $0x338] sm:$0xff]
    %v226 = vld [vmem:[#allocation7 + $0x340] sm:$0xff]
    %v227 = vld [vmem:[#allocation7 + $0x348] sm:$0xff]
    %v228 = vld [vmem:[#allocation7 + $0x350] sm:$0xff]
    %v229 = vld [vmem:[#allocation7 + $0x358] sm:$0xff]
    %v230 = vld [vmem:[#allocation7 + $0x360] sm:$0xff]
    %v231 = vld [vmem:[#allocation7 + $0x368] sm:$0xff]
    %v232 = vld [vmem:[#allocation7 + $0x370] sm:$0xff]
    %v233 = vld [vmem:[#allocation7 + $0x378] sm:$0xff]
    %v234 = vld [vmem:[#allocation7 + $0x380] sm:$0xff]
    %v235 = vld [vmem:[#allocation7 + $0x388] sm:$0xff]
    %v236 = vld [vmem:[#allocation7 + $0x390] sm:$0xff]
    %v237 = vld [vmem:[#allocation7 + $0x398] sm:$0xff]
    %v238 = vld [vmem:[#allocation7 + $0x3a0] sm:$0xff]
    %v239 = vld [vmem:[#allocation7 + $0x3a8] sm:$0xff]
    %v240 = vld [vmem:[#allocation7 + $0x3b0] sm:$0xff]
    %v241 = vld [vmem:[#allocation7 + $0x3b8] sm:$0xff]
    %v242 = vld [vmem:[#allocation7 + $0x3c0] sm:$0xff]
    %v243 = vld [vmem:[#allocation7 + $0x3c8] sm:$0xff]
    %v244 = vld [vmem:[#allocation7 + $0x3d0] sm:$0xff]
    %v245 = vld [vmem:[#allocation7 + $0x3d8] sm:$0xff]
    %v246 = vld [vmem:[#allocation7 + $0x3e0] sm:$0xff]
    %v247 = vld [vmem:[#allocation7 + $0x3e8] sm:$0xff]
    %v248 = vld [vmem:[#allocation7 + $0x3f0] sm:$0xff]
    %v249 = vld [vmem:[#allocation7 + $0x3f8] sm:$0xff]
    %v378 = vunpack.c.l.b16 %v122
    %v379 = vunpack.c.h.b16 %v122
    %v380 = vunpack.c.l.b16 %v123
    %v381 = vunpack.c.h.b16 %v123
    %v382 = vunpack.c.l.b16 %v124
    %v383 = vunpack.c.h.b16 %v124
    %v384 = vunpack.c.l.b16 %v125
    %v385 = vunpack.c.h.b16 %v125
    %v386 = vunpack.c.l.b16 %v126
    %v387 = vunpack.c.h.b16 %v126
    %v388 = vunpack.c.l.b16 %v127
    %v389 = vunpack.c.h.b16 %v127
    %v390 = vunpack.c.l.b16 %v128
    %v391 = vunpack.c.h.b16 %v128
    %v392 = vunpack.c.l.b16 %v129
    %v393 = vunpack.c.h.b16 %v129
    %v394 = vunpack.c.l.b16 %v130
    %v395 = vunpack.c.h.b16 %v130
    %v396 = vunpack.c.l.b16 %v131
    %v397 = vunpack.c.h.b16 %v131
    %v398 = vunpack.c.l.b16 %v132
    %v399 = vunpack.c.h.b16 %v132
    %v400 = vunpack.c.l.b16 %v133
    %v401 = vunpack.c.h.b16 %v133
    %v402 = vunpack.c.l.b16 %v134
    %v403 = vunpack.c.h.b16 %v134
    %v404 = vunpack.c.l.b16 %v135
    %v405 = vunpack.c.h.b16 %v135
    %v406 = vunpack.c.l.b16 %v136
    %v407 = vunpack.c.h.b16 %v136
    %v408 = vunpack.c.l.b16 %v137
    %v409 = vunpack.c.h.b16 %v137
    %v410 = vunpack.c.l.b16 %v138
    %v411 = vunpack.c.h.b16 %v138
    %v412 = vunpack.c.l.b16 %v139
    %v413 = vunpack.c.h.b16 %v139
    %v414 = vunpack.c.l.b16 %v140
    %v415 = vunpack.c.h.b16 %v140
    %v416 = vunpack.c.l.b16 %v141
    %v417 = vunpack.c.h.b16 %v141
    %v418 = vunpack.c.l.b16 %v142
    %v419 = vunpack.c.h.b16 %v142
    %v420 = vunpack.c.l.b16 %v143
    %v421 = vunpack.c.h.b16 %v143
    %v422 = vunpack.c.l.b16 %v144
    %v423 = vunpack.c.h.b16 %v144
    %v424 = vunpack.c.l.b16 %v145
    %v425 = vunpack.c.h.b16 %v145
    %v426 = vunpack.c.l.b16 %v146
    %v427 = vunpack.c.h.b16 %v146
    %v428 = vunpack.c.l.b16 %v147
    %v429 = vunpack.c.h.b16 %v147
    %v430 = vunpack.c.l.b16 %v148
    %v431 = vunpack.c.h.b16 %v148
    %v432 = vunpack.c.l.b16 %v149
    %v433 = vunpack.c.h.b16 %v149
    %v434 = vunpack.c.l.b16 %v150
    %v435 = vunpack.c.h.b16 %v150
    %v436 = vunpack.c.l.b16 %v151
    %v437 = vunpack.c.h.b16 %v151
    %v438 = vunpack.c.l.b16 %v152
    %v439 = vunpack.c.h.b16 %v152
    %v440 = vunpack.c.l.b16 %v153
    %v441 = vunpack.c.h.b16 %v153
    %v442 = vunpack.c.l.b16 %v154
    %v443 = vunpack.c.h.b16 %v154
    %v444 = vunpack.c.l.b16 %v155
    %v445 = vunpack.c.h.b16 %v155
    %v446 = vunpack.c.l.b16 %v156
    %v447 = vunpack.c.h.b16 %v156
    %v448 = vunpack.c.l.b16 %v157
    %v449 = vunpack.c.h.b16 %v157
    %v450 = vunpack.c.l.b16 %v158
    %v451 = vunpack.c.h.b16 %v158
    %v452 = vunpack.c.l.b16 %v159
    %v453 = vunpack.c.h.b16 %v159
    %v454 = vunpack.c.l.b16 %v160
    %v455 = vunpack.c.h.b16 %v160
    %v456 = vunpack.c.l.b16 %v161
    %v457 = vunpack.c.h.b16 %v161
    %v458 = vunpack.c.l.b16 %v162
    %v459 = vunpack.c.h.b16 %v162
    %v460 = vunpack.c.l.b16 %v163
    %v461 = vunpack.c.h.b16 %v163
    %v462 = vunpack.c.l.b16 %v164
    %v463 = vunpack.c.h.b16 %v164
    %v464 = vunpack.c.l.b16 %v165
    %v465 = vunpack.c.h.b16 %v165
    %v466 = vunpack.c.l.b16 %v166
    %v467 = vunpack.c.h.b16 %v166
    %v468 = vunpack.c.l.b16 %v167
    %v469 = vunpack.c.h.b16 %v167
    %v470 = vunpack.c.l.b16 %v168
    %v471 = vunpack.c.h.b16 %v168
    %v472 = vunpack.c.l.b16 %v169
    %v473 = vunpack.c.h.b16 %v169
    %v474 = vunpack.c.l.b16 %v170
    %v475 = vunpack.c.h.b16 %v170
    %v476 = vunpack.c.l.b16 %v171
    %v477 = vunpack.c.h.b16 %v171
    %v478 = vunpack.c.l.b16 %v172
    %v479 = vunpack.c.h.b16 %v172
    %v480 = vunpack.c.l.b16 %v173
    %v481 = vunpack.c.h.b16 %v173
    %v482 = vunpack.c.l.b16 %v174
    %v483 = vunpack.c.h.b16 %v174
    %v484 = vunpack.c.l.b16 %v175
    %v485 = vunpack.c.h.b16 %v175
    %v486 = vunpack.c.l.b16 %v176
    %v487 = vunpack.c.h.b16 %v176
    %v488 = vunpack.c.l.b16 %v177
    %v489 = vunpack.c.h.b16 %v177
    %v490 = vunpack.c.l.b16 %v178
    %v491 = vunpack.c.h.b16 %v178
    %v492 = vunpack.c.l.b16 %v179
    %v493 = vunpack.c.h.b16 %v179
    %v494 = vunpack.c.l.b16 %v180
    %v495 = vunpack.c.h.b16 %v180
    %v496 = vunpack.c.l.b16 %v181
    %v497 = vunpack.c.h.b16 %v181
    %v498 = vunpack.c.l.b16 %v182
    %v499 = vunpack.c.h.b16 %v182
    %v500 = vunpack.c.l.b16 %v183
    %v501 = vunpack.c.h.b16 %v183
    %v502 = vunpack.c.l.b16 %v184
    %v503 = vunpack.c.h.b16 %v184
    %v504 = vunpack.c.l.b16 %v185
    %v505 = vunpack.c.h.b16 %v185
    %v506 = vunpack.c.l.b16 %v186
    %v507 = vunpack.c.h.b16 %v186
    %v508 = vunpack.c.l.b16 %v187
    %v509 = vunpack.c.h.b16 %v187
    %v510 = vunpack.c.l.b16 %v188
    %v511 = vunpack.c.h.b16 %v188
    %v512 = vunpack.c.l.b16 %v189
    %v513 = vunpack.c.h.b16 %v189
    %v514 = vunpack.c.l.b16 %v190
    %v515 = vunpack.c.h.b16 %v190
    %v516 = vunpack.c.l.b16 %v191
    %v517 = vunpack.c.h.b16 %v191
    %v518 = vunpack.c.l.b16 %v192
    %v519 = vunpack.c.h.b16 %v192
    %v520 = vunpack.c.l.b16 %v193
    %v521 = vunpack.c.h.b16 %v193
    %v522 = vunpack.c.l.b16 %v194
    %v523 = vunpack.c.h.b16 %v194
    %v524 = vunpack.c.l.b16 %v195
    %v525 = vunpack.c.h.b16 %v195
    %v526 = vunpack.c.l.b16 %v196
    %v527 = vunpack.c.h.b16 %v196
    %v528 = vunpack.c.l.b16 %v197
    %v529 = vunpack.c.h.b16 %v197
    %v530 = vunpack.c.l.b16 %v198
    %v531 = vunpack.c.h.b16 %v198
    %v532 = vunpack.c.l.b16 %v199
    %v533 = vunpack.c.h.b16 %v199
    %v534 = vunpack.c.l.b16 %v200
    %v535 = vunpack.c.h.b16 %v200
    %v536 = vunpack.c.l.b16 %v201
    %v537 = vunpack.c.h.b16 %v201
    %v538 = vunpack.c.l.b16 %v202
    %v539 = vunpack.c.h.b16 %v202
    %v540 = vunpack.c.l.b16 %v203
    %v541 = vunpack.c.h.b16 %v203
    %v542 = vunpack.c.l.b16 %v204
    %v543 = vunpack.c.h.b16 %v204
    %v544 = vunpack.c.l.b16 %v205
    %v545 = vunpack.c.h.b16 %v205
    %v546 = vunpack.c.l.b16 %v206
    %v547 = vunpack.c.h.b16 %v206
    %v548 = vunpack.c.l.b16 %v207
    %v549 = vunpack.c.h.b16 %v207
    %v550 = vunpack.c.l.b16 %v208
    %v551 = vunpack.c.h.b16 %v208
    %v552 = vunpack.c.l.b16 %v209
    %v553 = vunpack.c.h.b16 %v209
    %v554 = vunpack.c.l.b16 %v210
    %v555 = vunpack.c.h.b16 %v210
    %v556 = vunpack.c.l.b16 %v211
    %v557 = vunpack.c.h.b16 %v211
    %v558 = vunpack.c.l.b16 %v212
    %v559 = vunpack.c.h.b16 %v212
    %v560 = vunpack.c.l.b16 %v213
    %v561 = vunpack.c.h.b16 %v213
    %v562 = vunpack.c.l.b16 %v214
    %v563 = vunpack.c.h.b16 %v214
    %v564 = vunpack.c.l.b16 %v215
    %v565 = vunpack.c.h.b16 %v215
    %v566 = vunpack.c.l.b16 %v216
    %v567 = vunpack.c.h.b16 %v216
    %v568 = vunpack.c.l.b16 %v217
    %v569 = vunpack.c.h.b16 %v217
    %v570 = vunpack.c.l.b16 %v218
    %v571 = vunpack.c.h.b16 %v218
    %v572 = vunpack.c.l.b16 %v219
    %v573 = vunpack.c.h.b16 %v219
    %v574 = vunpack.c.l.b16 %v220
    %v575 = vunpack.c.h.b16 %v220
    %v576 = vunpack.c.l.b16 %v221
    %v577 = vunpack.c.h.b16 %v221
    %v578 = vunpack.c.l.b16 %v222
    %v579 = vunpack.c.h.b16 %v222
    %v580 = vunpack.c.l.b16 %v223
    %v581 = vunpack.c.h.b16 %v223
    %v582 = vunpack.c.l.b16 %v224
    %v583 = vunpack.c.h.b16 %v224
    %v584 = vunpack.c.l.b16 %v225
    %v585 = vunpack.c.h.b16 %v225
    %v586 = vunpack.c.l.b16 %v226
    %v587 = vunpack.c.h.b16 %v226
    %v588 = vunpack.c.l.b16 %v227
    %v589 = vunpack.c.h.b16 %v227
    %v590 = vunpack.c.l.b16 %v228
    %v591 = vunpack.c.h.b16 %v228
    %v592 = vunpack.c.l.b16 %v229
    %v593 = vunpack.c.h.b16 %v229
    %v594 = vunpack.c.l.b16 %v230
    %v595 = vunpack.c.h.b16 %v230
    %v596 = vunpack.c.l.b16 %v231
    %v597 = vunpack.c.h.b16 %v231
    %v598 = vunpack.c.l.b16 %v232
    %v599 = vunpack.c.h.b16 %v232
    %v600 = vunpack.c.l.b16 %v233
    %v601 = vunpack.c.h.b16 %v233
    %v602 = vunpack.c.l.b16 %v234
    %v603 = vunpack.c.h.b16 %v234
    %v604 = vunpack.c.l.b16 %v235
    %v605 = vunpack.c.h.b16 %v235
    %v606 = vunpack.c.l.b16 %v236
    %v607 = vunpack.c.h.b16 %v236
    %v608 = vunpack.c.l.b16 %v237
    %v609 = vunpack.c.h.b16 %v237
    %v610 = vunpack.c.l.b16 %v238
    %v611 = vunpack.c.h.b16 %v238
    %v612 = vunpack.c.l.b16 %v239
    %v613 = vunpack.c.h.b16 %v239
    %v614 = vunpack.c.l.b16 %v240
    %v615 = vunpack.c.h.b16 %v240
    %v616 = vunpack.c.l.b16 %v241
    %v617 = vunpack.c.h.b16 %v241
    %v618 = vunpack.c.l.b16 %v242
    %v619 = vunpack.c.h.b16 %v242
    %v620 = vunpack.c.l.b16 %v243
    %v621 = vunpack.c.h.b16 %v243
    %v622 = vunpack.c.l.b16 %v244
    %v623 = vunpack.c.h.b16 %v244
    %v624 = vunpack.c.l.b16 %v245
    %v625 = vunpack.c.h.b16 %v245
    %v626 = vunpack.c.l.b16 %v246
    %v627 = vunpack.c.h.b16 %v246
    %v628 = vunpack.c.l.b16 %v247
    %v629 = vunpack.c.h.b16 %v247
    %v630 = vunpack.c.l.b16 %v248
    %v631 = vunpack.c.h.b16 %v248
    %v632 = vunpack.c.l.b16 %v249
    %v633 = vunpack.c.h.b16 %v249
    %v634 = vpack.c.b16 %v382, %v378
    %v635 = vpack.c.b16 %v383, %v379
    %v636 = vpack.c.b16 %v384, %v380
    %v637 = vpack.c.b16 %v385, %v381
    %v638 = vpack.c.b16 %v390, %v386
    %v639 = vpack.c.b16 %v391, %v387
    %v640 = vpack.c.b16 %v392, %v388
    %v641 = vpack.c.b16 %v393, %v389
    %v642 = vpack.c.b16 %v398, %v394
    %v643 = vpack.c.b16 %v399, %v395
    %v644 = vpack.c.b16 %v400, %v396
    %v645 = vpack.c.b16 %v401, %v397
    %v646 = vpack.c.b16 %v406, %v402
    %v647 = vpack.c.b16 %v407, %v403
    %v648 = vpack.c.b16 %v408, %v404
    %v649 = vpack.c.b16 %v409, %v405
    %v650 = vpack.c.b16 %v414, %v410
    %v651 = vpack.c.b16 %v415, %v411
    %v652 = vpack.c.b16 %v416, %v412
    %v653 = vpack.c.b16 %v417, %v413
    %v654 = vpack.c.b16 %v422, %v418
    %v655 = vpack.c.b16 %v423, %v419
    %v656 = vpack.c.b16 %v424, %v420
    %v657 = vpack.c.b16 %v425, %v421
    %v658 = vpack.c.b16 %v430, %v426
    %v659 = vpack.c.b16 %v431, %v427
    %v660 = vpack.c.b16 %v432, %v428
    %v661 = vpack.c.b16 %v433, %v429
    %v662 = vpack.c.b16 %v438, %v434
    %v663 = vpack.c.b16 %v439, %v435
    %v664 = vpack.c.b16 %v440, %v436
    %v665 = vpack.c.b16 %v441, %v437
    %v666 = vpack.c.b16 %v446, %v442
    %v667 = vpack.c.b16 %v447, %v443
    %v668 = vpack.c.b16 %v448, %v444
    %v669 = vpack.c.b16 %v449, %v445
    %v670 = vpack.c.b16 %v454, %v450
    %v671 = vpack.c.b16 %v455, %v451
    %v672 = vpack.c.b16 %v456, %v452
    %v673 = vpack.c.b16 %v457, %v453
    %v674 = vpack.c.b16 %v462, %v458
    %v675 = vpack.c.b16 %v463, %v459
    %v676 = vpack.c.b16 %v464, %v460
    %v677 = vpack.c.b16 %v465, %v461
    %v678 = vpack.c.b16 %v470, %v466
    %v679 = vpack.c.b16 %v471, %v467
    %v680 = vpack.c.b16 %v472, %v468
    %v681 = vpack.c.b16 %v473, %v469
    %v682 = vpack.c.b16 %v478, %v474
    %v683 = vpack.c.b16 %v479, %v475
    %v684 = vpack.c.b16 %v480, %v476
    %v685 = vpack.c.b16 %v481, %v477
    %v686 = vpack.c.b16 %v486, %v482
    %v687 = vpack.c.b16 %v487, %v483
    %v688 = vpack.c.b16 %v488, %v484
    %v689 = vpack.c.b16 %v489, %v485
    %v690 = vpack.c.b16 %v494, %v490
    %v691 = vpack.c.b16 %v495, %v491
    %v692 = vpack.c.b16 %v496, %v492
    %v693 = vpack.c.b16 %v497, %v493
    %v694 = vpack.c.b16 %v502, %v498
    %v695 = vpack.c.b16 %v503, %v499
    %v696 = vpack.c.b16 %v504, %v500
    %v697 = vpack.c.b16 %v505, %v501
    %v698 = vpack.c.b16 %v510, %v506
    %v699 = vpack.c.b16 %v511, %v507
    %v700 = vpack.c.b16 %v512, %v508
    %v701 = vpack.c.b16 %v513, %v509
    %v702 = vpack.c.b16 %v518, %v514
    %v703 = vpack.c.b16 %v519, %v515
    %v704 = vpack.c.b16 %v520, %v516
    %v705 = vpack.c.b16 %v521, %v517
    %v706 = vpack.c.b16 %v526, %v522
    %v707 = vpack.c.b16 %v527, %v523
    %v708 = vpack.c.b16 %v528, %v524
    %v709 = vpack.c.b16 %v529, %v525
    %v710 = vpack.c.b16 %v534, %v530
    %v711 = vpack.c.b16 %v535, %v531
    %v712 = vpack.c.b16 %v536, %v532
    %v713 = vpack.c.b16 %v537, %v533
    %v714 = vpack.c.b16 %v542, %v538
    %v715 = vpack.c.b16 %v543, %v539
    %v716 = vpack.c.b16 %v544, %v540
    %v717 = vpack.c.b16 %v545, %v541
    %v718 = vpack.c.b16 %v550, %v546
    %v719 = vpack.c.b16 %v551, %v547
    %v720 = vpack.c.b16 %v552, %v548
    %v721 = vpack.c.b16 %v553, %v549
    %v722 = vpack.c.b16 %v558, %v554
    %v723 = vpack.c.b16 %v559, %v555
    %v724 = vpack.c.b16 %v560, %v556
    %v725 = vpack.c.b16 %v561, %v557
    %v726 = vpack.c.b16 %v566, %v562
    %v727 = vpack.c.b16 %v567, %v563
    %v728 = vpack.c.b16 %v568, %v564
    %v729 = vpack.c.b16 %v569, %v565
    %v730 = vpack.c.b16 %v574, %v570
    %v731 = vpack.c.b16 %v575, %v571
    %v732 = vpack.c.b16 %v576, %v572
    %v733 = vpack.c.b16 %v577, %v573
    %v734 = vpack.c.b16 %v582, %v578
    %v735 = vpack.c.b16 %v583, %v579
    %v736 = vpack.c.b16 %v584, %v580
    %v737 = vpack.c.b16 %v585, %v581
    %v738 = vpack.c.b16 %v590, %v586
    %v739 = vpack.c.b16 %v591, %v587
    %v740 = vpack.c.b16 %v592, %v588
    %v741 = vpack.c.b16 %v593, %v589
    %v742 = vpack.c.b16 %v598, %v594
    %v743 = vpack.c.b16 %v599, %v595
    %v744 = vpack.c.b16 %v600, %v596
    %v745 = vpack.c.b16 %v601, %v597
    %v746 = vpack.c.b16 %v606, %v602
    %v747 = vpack.c.b16 %v607, %v603
    %v748 = vpack.c.b16 %v608, %v604
    %v749 = vpack.c.b16 %v609, %v605
    %v750 = vpack.c.b16 %v614, %v610
    %v751 = vpack.c.b16 %v615, %v611
    %v752 = vpack.c.b16 %v616, %v612
    %v753 = vpack.c.b16 %v617, %v613
    %v754 = vpack.c.b16 %v622, %v618
    %v755 = vpack.c.b16 %v623, %v619
    %v756 = vpack.c.b16 %v624, %v620
    %v757 = vpack.c.b16 %v625, %v621
    %v758 = vpack.c.b16 %v630, %v626
    %v759 = vpack.c.b16 %v631, %v627
    %v760 = vpack.c.b16 %v632, %v628
    %v761 = vpack.c.b16 %v633, %v629
    %890 = vmatprep.subr.bf16.mxu0 %v635
    %891 = vmatpush1.bf16.msra.mxu0 %v634
    %892 = vmatprep.subr.bf16.mxu0 %v639
    %893 = vmatpush1.bf16.msra.mxu0 %v638
    %894 = vmatprep.subr.bf16.mxu0 %v643
    %895 = vmatpush1.bf16.msra.mxu0 %v642
    %896 = vmatprep.subr.bf16.mxu0 %v647
    %897 = vmatpush1.bf16.msra.mxu0 %v646
    %898 = vmatprep.subr.bf16.mxu0 %v651
    %899 = vmatpush1.bf16.msra.mxu0 %v650
    %900 = vmatprep.subr.bf16.mxu0 %v655
    %901 = vmatpush1.bf16.msra.mxu0 %v654
    %902 = vmatprep.subr.bf16.mxu0 %v659
    %903 = vmatpush1.bf16.msra.mxu0 %v658
    %904 = vmatprep.subr.bf16.mxu0 %v663
    %905 = vmatpush1.bf16.msra.mxu0 %v662
    %906 = vmatprep.subr.bf16.mxu0 %v667
    %907 = vmatpush1.bf16.msra.mxu0 %v666
    %908 = vmatprep.subr.bf16.mxu0 %v671
    %909 = vmatpush1.bf16.msra.mxu0 %v670
    %910 = vmatprep.subr.bf16.mxu0 %v675
    %911 = vmatpush1.bf16.msra.mxu0 %v674
    %912 = vmatprep.subr.bf16.mxu0 %v679
    %913 = vmatpush1.bf16.msra.mxu0 %v678
    %914 = vmatprep.subr.bf16.mxu0 %v683
    %915 = vmatpush1.bf16.msra.mxu0 %v682
    %916 = vmatprep.subr.bf16.mxu0 %v687
    %917 = vmatpush1.bf16.msra.mxu0 %v686
    %918 = vmatprep.subr.bf16.mxu0 %v691
    %919 = vmatpush1.bf16.msra.mxu0 %v690
    %920 = vmatprep.subr.bf16.mxu0 %v695
    %921 = vmatpush1.bf16.msra.mxu0 %v694
    %922 = vmatprep.mubr.bf16.mxu0 %v95
    %923 = vmatmul.mubr.bf16.gmra.mrb[0].mxu0 %v94
    %v924 = vpop.f32.mrb[0].mxu0
    %v925 = vadd.f32 0.0, %v924
    %v926 = vpop.f32.mrb[0].mxu0
    %v927 = vadd.f32 0.0, %v926
    %v928 = vpop.f32.mrb[0].mxu0
    %v929 = vadd.f32 0.0, %v928
    %v930 = vpop.f32.mrb[0].mxu0
    %v931 = vadd.f32 0.0, %v930
    %932 = vmatprep.mubr.bf16.mxu0 %v115
    %933 = vmatmul.mubr.bf16.gmra.mrb[0].mxu0 %v114
    %v934 = vpop.f32.mrb[0].mxu0
    %v935 = vadd.f32 0.0, %v934
    %v936 = vpop.f32.mrb[0].mxu0
    %v937 = vadd.f32 0.0, %v936
    %v938 = vpop.f32.mrb[0].mxu0
    %v939 = vadd.f32 0.0, %v938
    %v940 = vpop.f32.mrb[0].mxu0
    %v941 = vadd.f32 0.0, %v940
    %942 = vdwg.mxu0
    %943 = vmatprep.subr.bf16.mxu0 %v699
    %944 = vmatpush1.bf16.msra.mxu0 %v698
    %945 = vmatprep.subr.bf16.mxu0 %v703
    %946 = vmatpush1.bf16.msra.mxu0 %v702
    %947 = vmatprep.subr.bf16.mxu0 %v707
    %948 = vmatpush1.bf16.msra.mxu0 %v706
    %949 = vmatprep.subr.bf16.mxu0 %v711
    %950 = vmatpush1.bf16.msra.mxu0 %v710
    %951 = vmatprep.subr.bf16.mxu0 %v715
    %952 = vmatpush1.bf16.msra.mxu0 %v714
    %953 = vmatprep.subr.bf16.mxu0 %v719
    %954 = vmatpush1.bf16.msra.mxu0 %v718
    %955 = vmatprep.subr.bf16.mxu0 %v723
    %956 = vmatpush1.bf16.msra.mxu0 %v722
    %957 = vmatprep.subr.bf16.mxu0 %v727
    %958 = vmatpush1.bf16.msra.mxu0 %v726
    %959 = vmatprep.subr.bf16.mxu0 %v731
    %960 = vmatpush1.bf16.msra.mxu0 %v730
    %961 = vmatprep.subr.bf16.mxu0 %v735
    %962 = vmatpush1.bf16.msra.mxu0 %v734
    %963 = vmatprep.subr.bf16.mxu0 %v739
    %964 = vmatpush1.bf16.msra.mxu0 %v738
    %965 = vmatprep.subr.bf16.mxu0 %v743
    %966 = vmatpush1.bf16.msra.mxu0 %v742
    %967 = vmatprep.subr.bf16.mxu0 %v747
    %968 = vmatpush1.bf16.msra.mxu0 %v746
    %969 = vmatprep.subr.bf16.mxu0 %v751
    %970 = vmatpush1.bf16.msra.mxu0 %v750
    %971 = vmatprep.subr.bf16.mxu0 %v755
    %972 = vmatpush1.bf16.msra.mxu0 %v754
    %973 = vmatprep.subr.bf16.mxu0 %v759
    %974 = vmatpush1.bf16.msra.mxu0 %v758
    %975 = vmatprep.mubr.bf16.mxu0 %v97
    %976 = vmatmul.mubr.bf16.gmra.mrb[0].mxu0 %v96
    %v977 = vpop.f32.mrb[0].mxu0
    %v978 = vadd.f32 %v925, %v977
    %v979 = vpop.f32.mrb[0].mxu0
    %v980 = vadd.f32 %v927, %v979
    %v981 = vpop.f32.mrb[0].mxu0
    %v982 = vadd.f32 %v929, %v981
    %v983 = vpop.f32.mrb[0].mxu0
    %v984 = vadd.f32 %v931, %v983
    %985 = vmatprep.mubr.bf16.mxu0 %v117
    %986 = vmatmul.mubr.bf16.gmra.mrb[0].mxu0 %v116
    %v987 = vpop.f32.mrb[0].mxu0
    %v988 = vadd.f32 %v935, %v987
    %v989 = vpop.f32.mrb[0].mxu0
    %v990 = vadd.f32 %v937, %v989
    %v991 = vpop.f32.mrb[0].mxu0
    %v992 = vadd.f32 %v939, %v991
    %v993 = vpop.f32.mrb[0].mxu0
    %v994 = vadd.f32 %v941, %v993
    %995 = vdwg.mxu0
    %996 = vmatprep.subr.bf16.mxu0 %v637
    %997 = vmatpush1.bf16.msra.mxu0 %v636
    %998 = vmatprep.subr.bf16.mxu0 %v641
    %999 = vmatpush1.bf16.msra.mxu0 %v640
    %1000 = vmatprep.subr.bf16.mxu0 %v645
    %1001 = vmatpush1.bf16.msra.mxu0 %v644
    %1002 = vmatprep.subr.bf16.mxu0 %v649
    %1003 = vmatpush1.bf16.msra.mxu0 %v648
    %1004 = vmatprep.subr.bf16.mxu0 %v653
    %1005 = vmatpush1.bf16.msra.mxu0 %v652
    %1006 = vmatprep.subr.bf16.mxu0 %v657
    %1007 = vmatpush1.bf16.msra.mxu0 %v656
    %1008 = vmatprep.subr.bf16.mxu0 %v661
    %1009 = vmatpush1.bf16.msra.mxu0 %v660
    %1010 = vmatprep.subr.bf16.mxu0 %v665
    %1011 = vmatpush1.bf16.msra.mxu0 %v664
    %1012 = vmatprep.subr.bf16.mxu0 %v669
    %1013 = vmatpush1.bf16.msra.mxu0 %v668
    %1014 = vmatprep.subr.bf16.mxu0 %v673
    %1015 = vmatpush1.bf16.msra.mxu0 %v672
    %1016 = vmatprep.subr.bf16.mxu0 %v677
    %1017 = vmatpush1.bf16.msra.mxu0 %v676
    %1018 = vmatprep.subr.bf16.mxu0 %v681
    %1019 = vmatpush1.bf16.msra.mxu0 %v680
    %1020 = vmatprep.subr.bf16.mxu0 %v685
    %1021 = vmatpush1.bf16.msra.mxu0 %v684
    %1022 = vmatprep.subr.bf16.mxu0 %v689
    %1023 = vmatpush1.bf16.msra.mxu0 %v688
    %1024 = vmatprep.subr.bf16.mxu0 %v693
    %1025 = vmatpush1.bf16.msra.mxu0 %v692
    %1026 = vmatprep.subr.bf16.mxu0 %v697
    %1027 = vmatpush1.bf16.msra.mxu0 %v696
    %1028 = vmatprep.mubr.bf16.mxu0 %v95
    %1029 = vmatmul.mubr.bf16.gmra.mrb[0].mxu0 %v94
    %v1030 = vpop.f32.mrb[0].mxu0
    %v1031 = vadd.f32 0.0, %v1030
    %v1032 = vpop.f32.mrb[0].mxu0
    %v1033 = vadd.f32 0.0, %v1032
    %v1034 = vpop.f32.mrb[0].mxu0
    %v1035 = vadd.f32 0.0, %v1034
    %v1036 = vpop.f32.mrb[0].mxu0
    %v1037 = vadd.f32 0.0, %v1036
    %1038 = vmatprep.mubr.bf16.mxu0 %v115
    %1039 = vmatmul.mubr.bf16.gmra.mrb[0].mxu0 %v114
    %v1040 = vpop.f32.mrb[0].mxu0
    %v1041 = vadd.f32 0.0, %v1040
    %v1042 = vpop.f32.mrb[0].mxu0
    %v1043 = vadd.f32 0.0, %v1042
    %v1044 = vpop.f32.mrb[0].mxu0
    %v1045 = vadd.f32 0.0, %v1044
    %v1046 = vpop.f32.mrb[0].mxu0
    %v1047 = vadd.f32 0.0, %v1046
    %1048 = vdwg.mxu0
    %1049 = vmatprep.subr.bf16.mxu0 %v701
    %1050 = vmatpush1.bf16.msra.mxu0 %v700
    %1051 = vmatprep.subr.bf16.mxu0 %v705
    %1052 = vmatpush1.bf16.msra.mxu0 %v704
    %1053 = vmatprep.subr.bf16.mxu0 %v709
    %1054 = vmatpush1.bf16.msra.mxu0 %v708
    %1055 = vmatprep.subr.bf16.mxu0 %v713
    %1056 = vmatpush1.bf16.msra.mxu0 %v712
    %1057 = vmatprep.subr.bf16.mxu0 %v717
    %1058 = vmatpush1.bf16.msra.mxu0 %v716
    %1059 = vmatprep.subr.bf16.mxu0 %v721
    %1060 = vmatpush1.bf16.msra.mxu0 %v720
    %1061 = vmatprep.subr.bf16.mxu0 %v725
    %1062 = vmatpush1.bf16.msra.mxu0 %v724
    %1063 = vmatprep.subr.bf16.mxu0 %v729
    %1064 = vmatpush1.bf16.msra.mxu0 %v728
    %1065 = vmatprep.subr.bf16.mxu0 %v733
    %1066 = vmatpush1.bf16.msra.mxu0 %v732
    %1067 = vmatprep.subr.bf16.mxu0 %v737
    %1068 = vmatpush1.bf16.msra.mxu0 %v736
    %1069 = vmatprep.subr.bf16.mxu0 %v741
    %1070 = vmatpush1.bf16.msra.mxu0 %v740
    %1071 = vmatprep.subr.bf16.mxu0 %v745
    %1072 = vmatpush1.bf16.msra.mxu0 %v744
    %1073 = vmatprep.subr.bf16.mxu0 %v749
    %1074 = vmatpush1.bf16.msra.mxu0 %v748
    %1075 = vmatprep.subr.bf16.mxu0 %v753
    %1076 = vmatpush1.bf16.msra.mxu0 %v752
    %1077 = vmatprep.subr.bf16.mxu0 %v757
    %1078 = vmatpush1.bf16.msra.mxu0 %v756
    %1079 = vmatprep.subr.bf16.mxu0 %v761
    %1080 = vmatpush1.bf16.msra.mxu0 %v760
    %1081 = vmatprep.mubr.bf16.mxu0 %v97
    %1082 = vmatmul.mubr.bf16.gmra.mrb[0].mxu0 %v96
    %v1083 = vpop.f32.mrb[0].mxu0
    %v1084 = vadd.f32 %v1031, %v1083
    %v1085 = vpop.f32.mrb[0].mxu0
    %v1086 = vadd.f32 %v1033, %v1085
    %v1087 = vpop.f32.mrb[0].mxu0
    %v1088 = vadd.f32 %v1035, %v1087
    %v1089 = vpop.f32.mrb[0].mxu0
    %v1090 = vadd.f32 %v1037, %v1089
    %1091 = vmatprep.mubr.bf16.mxu0 %v117
    %1092 = vmatmul.mubr.bf16.gmra.mrb[0].mxu0 %v116
    %v1093 = vpop.f32.mrb[0].mxu0
    %v1094 = vadd.f32 %v1041, %v1093
    %v1095 = vpop.f32.mrb[0].mxu0
    %v1096 = vadd.f32 %v1043, %v1095
    %v1097 = vpop.f32.mrb[0].mxu0
    %v1098 = vadd.f32 %v1045, %v1097
    %v1099 = vpop.f32.mrb[0].mxu0
    %v1100 = vadd.f32 %v1047, %v1099
    %1101 = vdwg.mxu0
    %v1102 = vmul.f32 %v978, %v978
    %v1103 = vmul.f32 %v980, %v980
    %v1104 = vmul.f32 %v982, %v982
    %v1105 = vmul.f32 %v984, %v984
    %v1106 = vmul.f32 %v988, %v988
    %v1107 = vmul.f32 %v990, %v990
    %v1108 = vmul.f32 %v992, %v992
    %v1109 = vmul.f32 %v994, %v994
    %v1110 = vmul.f32 %v1084, %v1084
    %v1111 = vmul.f32 %v1086, %v1086
    %v1112 = vmul.f32 %v1088, %v1088
    %v1113 = vmul.f32 %v1090, %v1090
    %v1114 = vmul.f32 %v1094, %v1094
    %v1115 = vmul.f32 %v1096, %v1096
    %v1116 = vmul.f32 %v1098, %v1098
    %v1117 = vmul.f32 %v1100, %v1100
    %v1118 = vadd.f32 %v1102, %v1110
    %v1119 = vadd.f32 %v1103, %v1111
    %v1120 = vadd.f32 %v1104, %v1112
    %v1121 = vadd.f32 %v1105, %v1113
    %v1122 = vadd.f32 %v1106, %v1114
    %v1123 = vadd.f32 %v1107, %v1115
    %v1124 = vadd.f32 %v1108, %v1116
    %v1125 = vadd.f32 %v1109, %v1117
    %v1126 = vmax.f32 %v1118, 1e-08
    %v1127 = vmax.f32 %v1119, 1e-08
    %v1128 = vmax.f32 %v1120, 1e-08
    %v1129 = vmax.f32 %v1121, 1e-08
    %v1130 = vmax.f32 %v1122, 1e-08
    %v1131 = vmax.f32 %v1123, 1e-08
    %v1132 = vmax.f32 %v1124, 1e-08
    %v1133 = vmax.f32 %v1125, 1e-08
    %v1134 = vrsqrt.pop %v1126
    %v1135 = vmul.f32 %v1126, %v1134
    %vm1136 = vcmp.eq.f32.partialorder %v1126, inf
    %v1137 = vsel %vm1136, %v1126, %v1135
    %vm1138 = vcmp.eq.f32.partialorder %v1126, 0.0
    %v1139 = vand.u32 %v1126, 2147483648
    %v1140 = vsel %vm1138, %v1139, %v1137
    %v1141 = vrsqrt.pop %v1127
    %v1142 = vmul.f32 %v1127, %v1141
    %vm1143 = vcmp.eq.f32.partialorder %v1127, inf
    %v1144 = vsel %vm1143, %v1127, %v1142
    %vm1145 = vcmp.eq.f32.partialorder %v1127, 0.0
    %v1146 = vand.u32 %v1127, 2147483648
    %v1147 = vsel %vm1145, %v1146, %v1144
    %v1148 = vrsqrt.pop %v1128
    %v1149 = vmul.f32 %v1128, %v1148
    %vm1150 = vcmp.eq.f32.partialorder %v1128, inf
    %v1151 = vsel %vm1150, %v1128, %v1149
    %vm1152 = vcmp.eq.f32.partialorder %v1128, 0.0
    %v1153 = vand.u32 %v1128, 2147483648
    %v1154 = vsel %vm1152, %v1153, %v1151
    %v1155 = vrsqrt.pop %v1129
    %v1156 = vmul.f32 %v1129, %v1155
    %vm1157 = vcmp.eq.f32.partialorder %v1129, inf
    %v1158 = vsel %vm1157, %v1129, %v1156
    %vm1159 = vcmp.eq.f32.partialorder %v1129, 0.0
    %v1160 = vand.u32 %v1129, 2147483648
    %v1161 = vsel %vm1159, %v1160, %v1158
    %v1162 = vrsqrt.pop %v1130
    %v1163 = vmul.f32 %v1130, %v1162
    %vm1164 = vcmp.eq.f32.partialorder %v1130, inf
    %v1165 = vsel %vm1164, %v1130, %v1163
    %vm1166 = vcmp.eq.f32.partialorder %v1130, 0.0
    %v1167 = vand.u32 %v1130, 2147483648
    %v1168 = vsel %vm1166, %v1167, %v1165
    %v1169 = vrsqrt.pop %v1131
    %v1170 = vmul.f32 %v1131, %v1169
    %vm1171 = vcmp.eq.f32.partialorder %v1131, inf
    %v1172 = vsel %vm1171, %v1131, %v1170
    %vm1173 = vcmp.eq.f32.partialorder %v1131, 0.0
    %v1174 = vand.u32 %v1131, 2147483648
    %v1175 = vsel %vm1173, %v1174, %v1172
    %v1176 = vrsqrt.pop %v1132
    %v1177 = vmul.f32 %v1132, %v1176
    %vm1178 = vcmp.eq.f32.partialorder %v1132, inf
    %v1179 = vsel %vm1178, %v1132, %v1177
    %vm1180 = vcmp.eq.f32.partialorder %v1132, 0.0
    %v1181 = vand.u32 %v1132, 2147483648
    %v1182 = vsel %vm1180, %v1181, %v1179
    %v1183 = vrsqrt.pop %v1133
    %v1184 = vmul.f32 %v1133, %v1183
    %vm1185 = vcmp.eq.f32.partialorder %v1133, inf
    %v1186 = vsel %vm1185, %v1133, %v1184
    %vm1187 = vcmp.eq.f32.partialorder %v1133, 0.0
    %v1188 = vand.u32 %v1133, 2147483648
    %v1189 = vsel %vm1187, %v1188, %v1186
    %v1190 = vpack.c.bf16 %v1154, %v1140
    %v1191 = vpack.c.bf16 %v1161, %v1147
    %v1192 = vpack.c.bf16 %v1182, %v1168
    %v1193 = vpack.c.bf16 %v1189, %v1175
    %v1194 = vld [vmem:[#allocation8] sm:$0xf]
    %v1195 = vld [vmem:[#allocation8 + $0x4] sm:$0xf]
    %v1196 = vld [vmem:[#allocation8 + $0x8] sm:$0xf]
    %v1197 = vld [vmem:[#allocation8 + $0xc] sm:$0xf]
    %v1198 = vld [vmem:[#allocation8 + $0x10] sm:$0xf]
    %v1199 = vld [vmem:[#allocation8 + $0x14] sm:$0xf]
    %v1200 = vld [vmem:[#allocation8 + $0x18] sm:$0xf]
    %v1201 = vld [vmem:[#allocation8 + $0x1c] sm:$0xf]
    %v1202 = vld [vmem:[#allocation8 + $0x20] sm:$0xf]
    %v1203 = vld [vmem:[#allocation8 + $0x24] sm:$0xf]
    %v1204 = vld [vmem:[#allocation8 + $0x28] sm:$0xf]
    %v1205 = vld [vmem:[#allocation8 + $0x2c] sm:$0xf]
    %v1206 = vld [vmem:[#allocation8 + $0x30] sm:$0xf]
    %v1207 = vld [vmem:[#allocation8 + $0x34] sm:$0xf]
    %v1208 = vld [vmem:[#allocation8 + $0x38] sm:$0xf]
    %v1209 = vld [vmem:[#allocation8 + $0x3c] sm:$0xf]
    %v1210 = vld [vmem:[#allocation8 + $0x40] sm:$0xf]
    %v1211 = vld [vmem:[#allocation8 + $0x44] sm:$0xf]
    %v1212 = vld [vmem:[#allocation8 + $0x48] sm:$0xf]
    %v1213 = vld [vmem:[#allocation8 + $0x4c] sm:$0xf]
    %v1214 = vld [vmem:[#allocation8 + $0x50] sm:$0xf]
    %v1215 = vld [vmem:[#allocation8 + $0x54] sm:$0xf]
    %v1216 = vld [vmem:[#allocation8 + $0x58] sm:$0xf]
    %v1217 = vld [vmem:[#allocation8 + $0x5c] sm:$0xf]
    %v1218 = vld [vmem:[#allocation8 + $0x60] sm:$0xf]
    %v1219 = vld [vmem:[#allocation8 + $0x64] sm:$0xf]
    %v1220 = vld [vmem:[#allocation8 + $0x68] sm:$0xf]
    %v1221 = vld [vmem:[#allocation8 + $0x6c] sm:$0xf]
    %v1222 = vld [vmem:[#allocation8 + $0x70] sm:$0xf]
    %v1223 = vld [vmem:[#allocation8 + $0x74] sm:$0xf]
    %v1224 = vld [vmem:[#allocation8 + $0x78] sm:$0xf]
    %v1225 = vld [vmem:[#allocation8 + $0x7c] sm:$0xf]
    %v1258 = vunpack.c.l.b16 %v1194
    %v1259 = vunpack.c.l.b16 %v1195
    %v1260 = vunpack.c.l.b16 %v1196
    %v1261 = vunpack.c.l.b16 %v1197
    %v1262 = vunpack.c.l.b16 %v1198
    %v1263 = vunpack.c.l.b16 %v1199
    %v1264 = vunpack.c.l.b16 %v1200
    %v1265 = vunpack.c.l.b16 %v1201
    %v1266 = vunpack.c.l.b16 %v1202
    %v1267 = vunpack.c.l.b16 %v1203
    %v1268 = vunpack.c.l.b16 %v1204
    %v1269 = vunpack.c.l.b16 %v1205
    %v1270 = vunpack.c.l.b16 %v1206
    %v1271 = vunpack.c.l.b16 %v1207
    %v1272 = vunpack.c.l.b16 %v1208
    %v1273 = vunpack.c.l.b16 %v1209
    %v1274 = vunpack.c.l.b16 %v1210
    %v1275 = vunpack.c.l.b16 %v1211
    %v1276 = vunpack.c.l.b16 %v1212
    %v1277 = vunpack.c.l.b16 %v1213
    %v1278 = vunpack.c.l.b16 %v1214
    %v1279 = vunpack.c.l.b16 %v1215
    %v1280 = vunpack.c.l.b16 %v1216
    %v1281 = vunpack.c.l.b16 %v1217
    %v1282 = vunpack.c.l.b16 %v1218
    %v1283 = vunpack.c.l.b16 %v1219
    %v1284 = vunpack.c.l.b16 %v1220
    %v1285 = vunpack.c.l.b16 %v1221
    %v1286 = vunpack.c.l.b16 %v1222
    %v1287 = vunpack.c.l.b16 %v1223
    %v1288 = vunpack.c.l.b16 %v1224
    %v1289 = vunpack.c.l.b16 %v1225
    %v1290 = vpack.c.b16 %v1259, %v1258
    %v1291 = vpack.c.b16 %v1261, %v1260
    %v1292 = vpack.c.b16 %v1263, %v1262
    %v1293 = vpack.c.b16 %v1265, %v1264
    %v1294 = vpack.c.b16 %v1267, %v1266
    %v1295 = vpack.c.b16 %v1269, %v1268
    %v1296 = vpack.c.b16 %v1271, %v1270
    %v1297 = vpack.c.b16 %v1273, %v1272
    %v1298 = vpack.c.b16 %v1275, %v1274
    %v1299 = vpack.c.b16 %v1277, %v1276
    %v1300 = vpack.c.b16 %v1279, %v1278
    %v1301 = vpack.c.b16 %v1281, %v1280
    %v1302 = vpack.c.b16 %v1283, %v1282
    %v1303 = vpack.c.b16 %v1285, %v1284
    %v1304 = vpack.c.b16 %v1287, %v1286
    %v1305 = vpack.c.b16 %v1289, %v1288
    %1322 = vmatprep.subr.bf16.mxu0 0
    %1323 = vmatpush1.bf16.msra.mxu0 %v1290
    %1324 = vmatprep.subr.bf16.mxu0 0
    %1325 = vmatpush1.bf16.msra.mxu0 %v1291
    %1326 = vmatprep.subr.bf16.mxu0 0
    %1327 = vmatpush1.bf16.msra.mxu0 %v1292
    %1328 = vmatprep.subr.bf16.mxu0 0
    %1329 = vmatpush1.bf16.msra.mxu0 %v1293
    %1330 = vmatprep.subr.bf16.mxu0 0
    %1331 = vmatpush1.bf16.msra.mxu0 %v1294
    %1332 = vmatprep.subr.bf16.mxu0 0
    %1333 = vmatpush1.bf16.msra.mxu0 %v1295
    %1334 = vmatprep.subr.bf16.mxu0 0
    %1335 = vmatpush1.bf16.msra.mxu0 %v1296
    %1336 = vmatprep.subr.bf16.mxu0 0
    %1337 = vmatpush1.bf16.msra.mxu0 %v1297
    %1338 = vmatprep.subr.bf16.mxu0 0
    %1339 = vmatpush1.bf16.msra.mxu0 %v1298
    %1340 = vmatprep.subr.bf16.mxu0 0
    %1341 = vmatpush1.bf16.msra.mxu0 %v1299
    %1342 = vmatprep.subr.bf16.mxu0 0
    %1343 = vmatpush1.bf16.msra.mxu0 %v1300
    %1344 = vmatprep.subr.bf16.mxu0 0
    %1345 = vmatpush1.bf16.msra.mxu0 %v1301
    %1346 = vmatprep.subr.bf16.mxu0 0
    %1347 = vmatpush1.bf16.msra.mxu0 %v1302
    %1348 = vmatprep.subr.bf16.mxu0 0
    %1349 = vmatpush1.bf16.msra.mxu0 %v1303
    %1350 = vmatprep.subr.bf16.mxu0 0
    %1351 = vmatpush1.bf16.msra.mxu0 %v1304
    %1352 = vmatprep.subr.bf16.mxu0 0
    %1353 = vmatpush1.bf16.msra.mxu0 %v1305
    %1354 = vmatprep.mubr.bf16.mxu0 %v1191
    %1355 = vmatmul.mubr.bf16.gmra.mrb[0].mxu0 %v1190
    %v1356 = vpop.f32.mrb[0].mxu0
    %v1357 = vadd.f32 0.0, %v1356
    %v1358 = vpop.f32.mrb[0].mxu0
    %v1359 = vpop.f32.mrb[0].mxu0
    %v1360 = vadd.f32 0.0, %v1359
    %v1361 = vpop.f32.mrb[0].mxu0
    %1362 = vmatprep.mubr.bf16.mxu0 %v1193
    %1363 = vmatmul.mubr.bf16.gmra.mrb[0].mxu0 %v1192
    %v1364 = vpop.f32.mrb[0].mxu0
    %v1365 = vadd.f32 0.0, %v1364
    %v1366 = vpop.f32.mrb[0].mxu0
    %v1367 = vpop.f32.mrb[0].mxu0
    %v1368 = vadd.f32 0.0, %v1367
    %v1369 = vpop.f32.mrb[0].mxu0
    %1370 = vdwg.mxu0
    %v1371 = vmax.f32 %v1357, 1e-08
    %v1372 = vmax.f32 %v1360, 1e-08
    %v1373 = vmax.f32 %v1365, 1e-08
    %v1374 = vmax.f32 %v1368, 1e-08
    %v1375 = vrcp.pop %v1373
    %v1376 = vmul.f32 %v1371, %v1375
    %v1377 = vrcp.pop %v1374
    %v1378 = vmul.f32 %v1372, %v1377
    %v1379 = vlog2.pop %v1376
    %v1380 = vmul.f32 %v1379, 0.6931472
    %v1381 = vlog2.pop %v1378
    %v1382 = vmul.f32 %v1381, 0.6931472
    %v1383 = vand.u32 2147483647, %v1380
    %v1384 = vand.u32 2147483647, %v1382
    %v1385 = vsub.f32 %v1371, %v1373
    %v1386 = vsub.f32 %v1372, %v1374
    %v1387 = vand.u32 2147483647, %v1385
    %v1388 = vand.u32 2147483647, %v1386
    %v1389 = vadd.f32 %v1383, %v1387
    %v1390 = vadd.f32 %v1384, %v1388
    %v1391 = vadd.f32 %v1389, %v1390
    %1392 = vst [vmem:[#allocation10] sm:$0xff] %v1391
    // Predicated region
    $region34: #{tpu_custom_call.1} parent=1 // pred_check
      _
    $region35: #{tpu_custom_call.1} parent=1 // pred_check_branch
      %1394 = sbr.rel (0) target = $region37
    $region36: #{tpu_custom_call.1} parent=1 // pred_region
      %s1396 = ssub.s32 128, 128
      %1397 = vsyncadd [#allocation4], %s1396
      %s1399 = sshll.u32 [#allocation10], 4
      %s1400 = int_to_ptr.vmem [resolvable:$true] %s1399
      %1402 = dma.vmem_to_hbm [thread:$0]  %s1400, 128, %s4, [#allocation4]
    $region37: #{tpu_custom_call.1} parent=1 // pred_fallthru
      _
    // Predicated region
    $region38: #{tpu_custom_call.1} parent=1 // pred_check
      _
    $region39: #{tpu_custom_call.1} parent=1 // pred_check_branch
      %1404 = sbr.rel (0) target = $region41
    $region40: #{tpu_custom_call.1} parent=1 // pred_region
      %1405 = dma.done [#allocation4], 128
    $region41: #{tpu_custom_call.1} parent=1 // pred_fallthru
      _
    %1406 = vsyncpa [#allocation3], 1
    %1407 = vsyncpa [#allocation6], 1
    %1408 = vsyncpa [#allocation9], 1
    %1409 = vsyncpa [#allocation4], 1

</llo_original>
